<compile_context>
chip_gen: v7x
topology: tpu7x:2x2x1
jax: 0.10.0
libtpu: 0.0.40
codegen_flags: <defaults>
</compile_context>

<pallas_src>
import math

import jax
import jax.numpy as jnp
from jax.experimental import pallas as pl
from jax.experimental.pallas import tpu as pltpu

# ----- small synthetic stand-ins for the Eagle config ------------------------
B        = 2       # text batch
N_SEQ    = 16      # sequence length
HIDDEN   = 256     # LM hidden size C (lane-dense)
VOCAB    = 32
N_HEADS  = 2
HEAD_DIM = 128     # real Eagle head dim -> per-head slices are full-lane views
FFN      = 512     # SwiGLU intermediate size (lane-dense)
N_LAYERS = 4       # stand-in for select_layer=12
B_IMG    = 2       # image tiles
IMG_CH   = 3
IMG_HW   = 8
PATCH    = 4
N_PATCH  = (IMG_HW // PATCH) ** 2       # = num_image_token = 4
PATCH_D  = IMG_CH * PATCH * PATCH       # 48
PATCH_D_PAD = 128                       # zero-padded so the K dim is lane-dense
VIT_DIM  = 128
MLP1_FF  = 256
PROJ_OUT = 128     # stand-in for the 1536-dim projector output (lane-dense)
IMG_CONTEXT_TOKEN_ID = 7


# ------------------------------- spec helpers --------------------------------
def _const_spec(shape):
    """Block covering the full array, same block for every grid step."""
    nd = len(shape)
    # TODO(synk): pipeline_mode=pl.Buffered(1) would single-buffer these
    # never-refetched blocks (saves VMEM on v7x); left at the default for safety.
    return pl.BlockSpec(shape, lambda *args, _nd=nd: (0,) * _nd)


def _layer_spec(shape):
    """Per-layer block of a (L, *shape) stacked array, squeezed layer dim."""
    nd = len(shape)
    return pl.BlockSpec((None,) + shape, lambda l, _nd=nd: (l,) + (0,) * _nd)


# ------------------------------- dense kernel --------------------------------
def _dense_kernel(x_ref, w_ref, b_ref, o_ref):
    o_ref[...] = (jnp.dot(x_ref[...].astype(jnp.bfloat16), w_ref[...],
                          preferred_element_type=jnp.float32) + b_ref[...])


def dense(x, w, b, *, block_m=256):
    M, K = x.shape
    _, Nout = w.shape
    bm = min(block_m, M)
    return pl.pallas_call(
        _dense_kernel,
        out_shape=jax.ShapeDtypeStruct((M, Nout), jnp.float32),
        grid=(pl.cdiv(M, bm),),
        in_specs=[pl.BlockSpec((bm, K), lambda i: (i, 0)),
                  _const_spec((K, Nout)), _const_spec((1, Nout))],
        out_specs=pl.BlockSpec((bm, Nout), lambda i: (i, 0)),
        compiler_params=pltpu.CompilerParams(dimension_semantics=("parallel",)),
    )(x, w, b)


# ------------------------------- vision kernel -------------------------------
def _vision_kernel(p_ref, pw_ref, pb_ref, lng_ref, lnb_ref,
                   w1_ref, b1_ref, w2_ref, b2_ref, o_ref):
    # Fused: patch-embed Linear -> LayerNorm -> Linear -> GELU -> Linear (mlp1).
    p = p_ref[...].astype(jnp.bfloat16)
    vit = jnp.dot(p, pw_ref[...], preferred_element_type=jnp.float32) + pb_ref[...]
    mu = jnp.mean(vit, axis=-1, keepdims=True)
    var = jnp.mean((vit - mu) ** 2, axis=-1, keepdims=True)
    xn = (vit - mu) * jax.lax.rsqrt(var + 1e-6) * lng_ref[...] + lnb_ref[...]
    h = jnp.dot(xn.astype(jnp.bfloat16), w1_ref[...],
                preferred_element_type=jnp.float32) + b1_ref[...]
    # TODO(synk): torch.nn.GELU default is the exact erf form; tanh approx used here.
    h = jax.nn.gelu(h, approximate=True)
    o_ref[...] = jnp.dot(h.astype(jnp.bfloat16), w2_ref[...],
                         preferred_element_type=jnp.float32) + b2_ref[...]


def vision_tower(p, params, *, block_m=256):
    M = p.shape[0]
    bm = min(block_m, M)
    return pl.pallas_call(
        _vision_kernel,
        out_shape=jax.ShapeDtypeStruct((M, HIDDEN), jnp.float32),
        grid=(pl.cdiv(M, bm),),
        in_specs=[pl.BlockSpec((bm, PATCH_D_PAD), lambda i: (i, 0)),
                  _const_spec((PATCH_D_PAD, VIT_DIM)), _const_spec((1, VIT_DIM)),
                  _const_spec((1, VIT_DIM)), _const_spec((1, VIT_DIM)),
                  _const_spec((VIT_DIM, MLP1_FF)), _const_spec((1, MLP1_FF)),
                  _const_spec((MLP1_FF, HIDDEN)), _const_spec((1, HIDDEN))],
        out_specs=pl.BlockSpec((bm, HIDDEN), lambda i: (i, 0)),
        compiler_params=pltpu.CompilerParams(dimension_semantics=("parallel",)),
    )(p, params["patch_w"], params["patch_b"],
      params["mlp1_ln_g"], params["mlp1_ln_b"],
      params["mlp1_w1"], params["mlp1_b1"], params["mlp1_w2"], params["mlp1_b2"])


# --------------------------- fused decoder stack ------------------------------
def _decoder_stack_kernel(x0_ref, rowstart_ref, kvalid_ref,
                          ln1_ref, wqkv_ref, wo_ref,
                          ln2_ref, wgu_ref, wd_ref,
                          lnf_ref, pw_ref, pb_ref,
                          hid_ref, proj_ref,
                          x_sc, bias_sc):
    """One grid step == one decoder layer.  x is carried in VMEM scratch."""
    l = pl.program_id(0)
    m = x_sc.shape[0]

    @pl.when(l == 0)
    def _init():
        x_sc[...] = x0_ref[...]
        # Causal + key-padding + block-diagonal (per-batch) additive bias,
        # built once from iota/compares (VPU filler, no (M,M) HBM traffic).
        q_idx = jax.lax.broadcasted_iota(jnp.int32, (m, m), 0)
        k_idx = jax.lax.broadcasted_iota(jnp.int32, (m, m), 1)
        allow = ((k_idx >= rowstart_ref[...])   # key inside this query's batch
                 & (k_idx <= q_idx)             # causal
                 & (kvalid_ref[...] > 0))       # key not padding
        bias_sc[...] = jnp.where(allow, 0.0, -1e9).astype(jnp.float32)

    x = x_sc[...]                                                 # (M, C) f32

    def rms(v, g):
        return v * jax.lax.rsqrt(jnp.mean(v * v, axis=-1, keepdims=True) + 1e-6) * g

    # --- self-attention block (pre-RMSNorm), fused QKV matmul ---
    xn = rms(x, ln1_ref[...])
    qkv = jnp.dot(xn.astype(jnp.bfloat16), wqkv_ref[...],
                  preferred_element_type=jnp.float32)             # (M, 3C) f32
    qkv_b = qkv.astype(jnp.bfloat16)

    scale = 1.0 / math.sqrt(HEAD_DIM)
    bias = bias_sc[...]
    head_outs = []
    # TODO(synk): rotary position embedding of the pretrained LM is omitted.
    for h in range(N_HEADS):
        # Per-head Q/K/V are full-128-lane views of the fused QKV output (free).
        qh = qkv_b[:, h * HEAD_DIM:(h + 1) * HEAD_DIM]
        kh = qkv_b[:, HIDDEN + h * HEAD_DIM: HIDDEN + (h + 1) * HEAD_DIM]
        vh = qkv_b[:, 2 * HIDDEN + h * HEAD_DIM: 2 * HIDDEN + (h + 1) * HEAD_DIM]
        s = jax.lax.dot_general(qh, kh, (((1,), (1,)), ((), ())),
                                preferred_element_type=jnp.float32) * scale
        s = s + bias
        s = s - jnp.max(s, axis=-1, keepdims=True)
        p = jnp.exp(s)
        p = p * pl.reciprocal(jnp.sum(p, axis=-1, keepdims=True), approx=True)
        head_outs.append(jnp.dot(p.astype(jnp.bfloat16), vh,
                                 preferred_element_type=jnp.float32))
    o = jnp.concatenate(head_outs, axis=-1)                       # (M, C) f32
    x = x + jnp.dot(o.astype(jnp.bfloat16), wo_ref[...],
                    preferred_element_type=jnp.float32)

    # --- SwiGLU MLP block (pre-RMSNorm), fused gate+up matmul ---
    xn2 = rms(x, ln2_ref[...])
    gu = jnp.dot(xn2.astype(jnp.bfloat16), wgu_ref[...],
                 preferred_element_type=jnp.float32)              # (M, 2*FFN)
    g = gu[:, :FFN]
    u = gu[:, FFN:]
    hact = g * jax.nn.sigmoid(g) * u                              # SiLU(g) * u, f32
    x = x + jnp.dot(hact.astype(jnp.bfloat16), wd_ref[...],
                    preferred_element_type=jnp.float32)

    x_sc[...] = x
    hid_ref[...] = x

    @pl.when(l == pl.num_programs(0) - 1)
    def _finalize():
        # Final RMSNorm of the truncated LM + projector fused into the epilogue.
        xf = rms(x, lnf_ref[...])
        hid_ref[...] = xf
        proj_ref[...] = (jnp.dot(xf.astype(jnp.bfloat16), pw_ref[...],
                                 preferred_element_type=jnp.float32)
                         + pb_ref[...])


def decoder_stack(x_flat, row_start, key_valid, stack, final_ln, proj_w, proj_b):
    m, c = x_flat.shape
    n_layers = stack["wqkv"].shape[0]

    grid_spec = pltpu.PrefetchScalarGridSpec(
        num_scalar_prefetch=0,
        grid=(n_layers,),
        in_specs=[
            _const_spec((m, c)),                 # x0
            _const_spec((m, 1)),                 # per-query batch start index
            _const_spec((1, m)),                 # key-valid mask
            _layer_spec((1, c)),                 # ln1
            _layer_spec((c, 3 * c)),             # fused Wq|Wk|Wv
            _layer_spec((c, c)),                 # Wo
            _layer_spec((1, c)),                 # ln2
            _layer_spec((c, 2 * FFN)),           # fused Wgate|Wup
            _layer_spec((FFN, c)),               # Wdown
            _const_spec((1, c)),                 # final RMSNorm gain
            _const_spec((c, PROJ_OUT)),          # projector W
            _const_spec((1, PROJ_OUT)),          # projector b
        ],
        out_specs=(pl.BlockSpec((m, c), lambda l: (0, 0)),
                   pl.BlockSpec((m, PROJ_OUT), lambda l: (0, 0))),
        scratch_shapes=[pltpu.VMEM((m, c), jnp.float32),      # residual stream
                        pltpu.VMEM((m, m), jnp.float32)],     # attention bias
    )
    return pl.pallas_call(
        _decoder_stack_kernel,
        out_shape=(jax.ShapeDtypeStruct((m, c), jnp.float32),
                   jax.ShapeDtypeStruct((m, PROJ_OUT), jnp.float32)),
        grid_spec=grid_spec,
        compiler_params=pltpu.CompilerParams(
            dimension_semantics=("arbitrary",),      # layers are sequential
            vmem_limit_bytes=64 * 1024 * 1024),
    )(x_flat, row_start, key_valid,
      stack["ln1"], stack["wqkv"], stack["wo"],
      stack["ln2"], stack["wgu"], stack["wd"],
      final_ln, proj_w, proj_b)


# ------------------------------- model glue -----------------------------------
def extract_feature(params, pixel_values):
    """Synthetic Eagle vision tower: patch-embed + mlp1 projector (one fused Pallas call)."""
    # TODO(synk): the full pretrained Eagle ViT encoder + pixel shuffle is replaced
    # by this synthetic patch-embed + mlp1 (HF checkpoint loading not reproducible).
    bimg = pixel_values.shape[0]
    hp = wp = IMG_HW // PATCH
    p = pixel_values.reshape(bimg, IMG_CH, hp, PATCH, wp, PATCH)
    p = p.transpose(0, 2, 4, 1, 3, 5).reshape(bimg * hp * wp, PATCH_D)
    p = jnp.pad(p, ((0, 0), (0, PATCH_D_PAD - PATCH_D)))           # lane-dense K
    vit = vision_tower(p, params)                                  # (bimg*P, HIDDEN)
    return vit.reshape(bimg, N_PATCH, HIDDEN)


def eagle_backbone_forward(params, pixel_values, input_ids, attention_mask,
                           reproject_vision=False):
    # --- get_embeddings: token embed + image-token scatter (plain JAX) ---
    vit_embeds = extract_feature(params, pixel_values)             # (Bimg, P, C)
    input_embeds = jnp.take(params["tok_emb"], input_ids, axis=0)  # (B, N, C)
    bq, nq, cq = input_embeds.shape

    flat_embeds = input_embeds.reshape(bq * nq, cq)
    flat_ids = input_ids.reshape(bq * nq)
    selected = flat_ids == IMG_CONTEXT_TOKEN_ID
    vit_flat = vit_embeds.reshape(-1, cq)
    # TODO(synk): torch masked-scatter errors if #IMG_CONTEXT tokens != #vit tokens;
    # this cumsum+clip variant silently clamps on a mismatch.
    pos = jnp.cumsum(selected.astype(jnp.int32)) - 1
    gathered = vit_flat[jnp.clip(pos, 0, vit_flat.shape[0] - 1)]
    x_flat = jnp.where(selected[:, None], gathered, flat_embeds)   # (B*N, C)

    # Only small 1-D masks cross the kernel boundary; the (M,M) bias is built
    # in-kernel once and kept in VMEM scratch for all layers.
    tok = jnp.arange(bq * nq, dtype=jnp.int32)
    row_start = ((tok // nq) * nq).reshape(bq * nq, 1)             # batch start idx
    key_valid = attention_mask.reshape(1, bq * nq).astype(jnp.int32)

    hid_flat, proj_flat = decoder_stack(
        x_flat, row_start, key_valid, params["stack"],
        params["final_ln"], params["proj_w"], params["proj_b"])

    if reproject_vision:
        flat = jnp.where(selected[:, None], gathered, hid_flat)
        proj_flat = dense(flat, params["proj_w"], params["proj_b"])

    return {"backbone_features": proj_flat.reshape(bq, nq, PROJ_OUT),
            "backbone_attention_mask": attention_mask}


def init_params(key):
    keys = jax.random.split(key, 12)
    it = iter(keys)

    def nrm(shape, dtype=jnp.bfloat16, scale=0.02):
        return (scale * jax.random.normal(next(it), shape, jnp.float32)).astype(dtype)

    patch_w = nrm((PATCH_D, VIT_DIM), jnp.float32)
    patch_w = jnp.pad(patch_w, ((0, PATCH_D_PAD - PATCH_D), (0, 0))).astype(jnp.bfloat16)

    params = {
        "patch_w": patch_w,                                        # (128, VIT_DIM) bf16
        "patch_b": jnp.zeros((1, VIT_DIM), jnp.float32),
        "mlp1_ln_g": jnp.ones((1, VIT_DIM), jnp.float32),
        "mlp1_ln_b": jnp.zeros((1, VIT_DIM), jnp.float32),
        "mlp1_w1": nrm((VIT_DIM, MLP1_FF)),
        "mlp1_b1": jnp.zeros((1, MLP1_FF), jnp.float32),
        "mlp1_w2": nrm((MLP1_FF, HIDDEN)),
        "mlp1_b2": jnp.zeros((1, HIDDEN), jnp.float32),
        "tok_emb": nrm((VOCAB, HIDDEN), jnp.float32),
        "proj_w": nrm((HIDDEN, PROJ_OUT)),
        "proj_b": jnp.zeros((1, PROJ_OUT), jnp.float32),
        "final_ln": jnp.ones((1, HIDDEN), jnp.float32),
        # Per-layer weights stacked on a leading layer axis -> streamed by the
        # fused decoder-stack kernel's layer grid axis (double-buffered DMA).
        "stack": {
            "ln1":  jnp.ones((N_LAYERS, 1, HIDDEN), jnp.float32),
            "wqkv": nrm((N_LAYERS, HIDDEN, 3 * HIDDEN)),   # fused Q|K|V
            "wo":   nrm((N_LAYERS, HIDDEN, HIDDEN)),
            "ln2":  jnp.ones((N_LAYERS, 1, HIDDEN), jnp.float32),
            "wgu":  nrm((N_LAYERS, HIDDEN, 2 * FFN)),      # fused gate|up
            "wd":   nrm((N_LAYERS, FFN, HIDDEN)),
        },
    }
    return params


if __name__ == "__main__":
    key = jax.random.PRNGKey(0)
    kp, kpix, kids = jax.random.split(key, 3)

    params = init_params(kp)

    # pixel_values in PyTorch NCHW layout
    pixel_values = jax.random.normal(kpix, (B_IMG, IMG_CH, IMG_HW, IMG_HW),
                                     jnp.float32)
    # input_ids: avoid the image-context token id in random positions, then insert
    # exactly num_image_token image-context tokens per sequence.
    ids = jax.random.randint(kids, (B, N_SEQ), 8, VOCAB)
    ids = ids.at[:, 2:2 + N_PATCH].set(IMG_CONTEXT_TOKEN_ID)
    input_ids = ids.astype(jnp.int32)
    attention_mask = jnp.ones((B, N_SEQ), jnp.int32).at[1, -2:].set(0)

    out = eagle_backbone_forward(params, pixel_values, input_ids, attention_mask)
    jax.block_until_ready(out["backbone_features"])
    jax.block_until_ready(out["backbone_attention_mask"])

    assert out["backbone_features"].shape == (B, N_SEQ, PROJ_OUT)
    assert out["backbone_attention_mask"].shape == (B, N_SEQ)
    print("KERNEL_OK")
</pallas_src>

<mosaic_0001>
module attributes {stable_mosaic.version = 11 : i64} {
  func.func @_vision_kernel(%arg0: i32, %arg1: memref<8x128xf32, #tpu.memory_space<vmem>>, %arg2: memref<128x128xbf16, #tpu.memory_space<vmem>>, %arg3: memref<1x128xf32, #tpu.memory_space<vmem>>, %arg4: memref<1x128xf32, #tpu.memory_space<vmem>>, %arg5: memref<1x128xf32, #tpu.memory_space<vmem>>, %arg6: memref<128x256xbf16, #tpu.memory_space<vmem>>, %arg7: memref<1x256xf32, #tpu.memory_space<vmem>>, %arg8: memref<256x256xbf16, #tpu.memory_space<vmem>>, %arg9: memref<1x256xf32, #tpu.memory_space<vmem>>, %arg10: memref<8x256xf32, #tpu.memory_space<vmem>>) attributes {dimension_semantics = [#tpu.dimension_semantics<parallel>], iteration_bounds = array<i64: 1>, scalar_prefetch = 0 : i64, scratch_operands = 0 : i64, tpu.core_type = #tpu.core_type<tc>, window_params = [{transform_indices = @transform_0, window_bounds = array<i64: 8, 128>}, {pipeline_mode = #tpu.pipeline_mode<synchronous>, transform_indices = @transform_1, window_bounds = array<i64: 128, 128>}, {pipeline_mode = #tpu.pipeline_mode<synchronous>, transform_indices = @transform_2, window_bounds = array<i64: 1, 128>}, {pipeline_mode = #tpu.pipeline_mode<synchronous>, transform_indices = @transform_3, window_bounds = array<i64: 1, 128>}, {pipeline_mode = #tpu.pipeline_mode<synchronous>, transform_indices = @transform_4, window_bounds = array<i64: 1, 128>}, {pipeline_mode = #tpu.pipeline_mode<synchronous>, transform_indices = @transform_5, window_bounds = array<i64: 128, 256>}, {pipeline_mode = #tpu.pipeline_mode<synchronous>, transform_indices = @transform_6, window_bounds = array<i64: 1, 256>}, {pipeline_mode = #tpu.pipeline_mode<synchronous>, transform_indices = @transform_7, window_bounds = array<i64: 256, 256>}, {pipeline_mode = #tpu.pipeline_mode<synchronous>, transform_indices = @transform_8, window_bounds = array<i64: 1, 256>}, {transform_indices = @transform_9, window_bounds = array<i64: 8, 256>}]} {
    %c0 = arith.constant 0 : index
    %c0_0 = arith.constant 0 : index
    %0 = vector.load %arg1[%c0, %c0_0] : memref<8x128xf32, #tpu.memory_space<vmem>>, vector<8x128xf32>
    %1 = arith.truncf %0 : vector<8x128xf32> to vector<8x128xbf16>
    %c0_1 = arith.constant 0 : index
    %c0_2 = arith.constant 0 : index
    %2 = vector.load %arg2[%c0_1, %c0_2] : memref<128x128xbf16, #tpu.memory_space<vmem>>, vector<128x128xbf16>
    %cst = arith.constant dense<0.000000e+00> : vector<8x128xf32>
    %3 = tpu.matmul %1, %2, %cst {dimension_numbers = #tpu.dot_dimension_numbers<[1], [0], [0], [1], [0, 0, 1, 1], [], []>} : vector<8x128xbf16>, vector<128x128xbf16>, vector<8x128xf32> -> vector<8x128xf32>
    %c0_3 = arith.constant 0 : index
    %c0_4 = arith.constant 0 : index
    %4 = vector.load %arg3[%c0_3, %c0_4] : memref<1x128xf32, #tpu.memory_space<vmem>>, vector<1x128xf32>
    %5 = vector.broadcast %4 : vector<1x128xf32> to vector<8x128xf32>
    %6 = arith.addf %3, %5 : vector<8x128xf32>
    %cst_5 = arith.constant dense<0.000000e+00> : vector<8xf32>
    %7 = vector.multi_reduction <add>, %6, %cst_5 [1] : vector<8x128xf32> to vector<8xf32>
    %8 = vector.shape_cast %7 : vector<8xf32> to vector<8x1xf32>
    %cst_6 = arith.constant 1.280000e+02 : f32
    %9 = vector.broadcast %cst_6 : f32 to vector<8x1xf32>
    %10 = arith.divf %8, %9 : vector<8x1xf32>
    %11 = vector.broadcast %10 : vector<8x1xf32> to vector<8x128xf32>
    %12 = arith.subf %6, %11 : vector<8x128xf32>
    %13 = arith.mulf %12, %12 : vector<8x128xf32>
    %cst_7 = arith.constant dense<0.000000e+00> : vector<8xf32>
    %14 = vector.multi_reduction <add>, %13, %cst_7 [1] : vector<8x128xf32> to vector<8xf32>
    %15 = vector.shape_cast %14 : vector<8xf32> to vector<8x1xf32>
    %cst_8 = arith.constant 1.280000e+02 : f32
    %16 = vector.broadcast %cst_8 : f32 to vector<8x1xf32>
    %17 = arith.divf %15, %16 : vector<8x1xf32>
    %18 = vector.broadcast %10 : vector<8x1xf32> to vector<8x128xf32>
    %19 = arith.subf %6, %18 : vector<8x128xf32>
    %cst_9 = arith.constant 9.99999997E-7 : f32
    %20 = vector.broadcast %cst_9 : f32 to vector<8x1xf32>
    %21 = arith.addf %17, %20 : vector<8x1xf32>
    %22 = math.rsqrt %21 : vector<8x1xf32>
    %23 = vector.broadcast %22 : vector<8x1xf32> to vector<8x128xf32>
    %24 = arith.mulf %19, %23 : vector<8x128xf32>
    %c0_10 = arith.constant 0 : index
    %c0_11 = arith.constant 0 : index
    %25 = vector.load %arg4[%c0_10, %c0_11] : memref<1x128xf32, #tpu.memory_space<vmem>>, vector<1x128xf32>
    %26 = vector.broadcast %25 : vector<1x128xf32> to vector<8x128xf32>
    %27 = arith.mulf %24, %26 : vector<8x128xf32>
    %c0_12 = arith.constant 0 : index
    %c0_13 = arith.constant 0 : index
    %28 = vector.load %arg5[%c0_12, %c0_13] : memref<1x128xf32, #tpu.memory_space<vmem>>, vector<1x128xf32>
    %29 = vector.broadcast %28 : vector<1x128xf32> to vector<8x128xf32>
    %30 = arith.addf %27, %29 : vector<8x128xf32>
    %31 = arith.truncf %30 : vector<8x128xf32> to vector<8x128xbf16>
    %c0_14 = arith.constant 0 : index
    %c0_15 = arith.constant 0 : index
    %32 = vector.load %arg6[%c0_14, %c0_15] : memref<128x256xbf16, #tpu.memory_space<vmem>>, vector<128x256xbf16>
    %cst_16 = arith.constant dense<0.000000e+00> : vector<8x256xf32>
    %33 = tpu.matmul %31, %32, %cst_16 {dimension_numbers = #tpu.dot_dimension_numbers<[1], [0], [0], [1], [0, 0, 1, 1], [], []>} : vector<8x128xbf16>, vector<128x256xbf16>, vector<8x256xf32> -> vector<8x256xf32>
    %c0_17 = arith.constant 0 : index
    %c0_18 = arith.constant 0 : index
    %34 = vector.load %arg7[%c0_17, %c0_18] : memref<1x256xf32, #tpu.memory_space<vmem>>, vector<1x256xf32>
    %35 = vector.broadcast %34 : vector<1x256xf32> to vector<8x256xf32>
    %36 = arith.addf %33, %35 : vector<8x256xf32>
    %37 = arith.mulf %36, %36 : vector<8x256xf32>
    %38 = arith.mulf %36, %37 : vector<8x256xf32>
    %cst_19 = arith.constant 4.471500e-02 : f32
    %39 = vector.broadcast %cst_19 : f32 to vector<8x256xf32>
    %40 = arith.mulf %39, %38 : vector<8x256xf32>
    %41 = arith.addf %36, %40 : vector<8x256xf32>
    %cst_20 = arith.constant 0.797884583 : f32
    %42 = vector.broadcast %cst_20 : f32 to vector<8x256xf32>
    %43 = arith.mulf %42, %41 : vector<8x256xf32>
    %44 = math.tanh %43 : vector<8x256xf32>
    %cst_21 = arith.constant 1.000000e+00 : f32
    %45 = vector.broadcast %cst_21 : f32 to vector<8x256xf32>
    %46 = arith.addf %45, %44 : vector<8x256xf32>
    %cst_22 = arith.constant 5.000000e-01 : f32
    %47 = vector.broadcast %cst_22 : f32 to vector<8x256xf32>
    %48 = arith.mulf %47, %46 : vector<8x256xf32>
    %49 = arith.mulf %36, %48 : vector<8x256xf32>
    %50 = arith.truncf %49 : vector<8x256xf32> to vector<8x256xbf16>
    %c0_23 = arith.constant 0 : index
    %c0_24 = arith.constant 0 : index
    %51 = vector.load %arg8[%c0_23, %c0_24] : memref<256x256xbf16, #tpu.memory_space<vmem>>, vector<256x256xbf16>
    %cst_25 = arith.constant dense<0.000000e+00> : vector<8x256xf32>
    %52 = tpu.matmul %50, %51, %cst_25 {dimension_numbers = #tpu.dot_dimension_numbers<[1], [0], [0], [1], [0, 0, 1, 1], [], []>} : vector<8x256xbf16>, vector<256x256xbf16>, vector<8x256xf32> -> vector<8x256xf32>
    %c0_26 = arith.constant 0 : index
    %c0_27 = arith.constant 0 : index
    %53 = vector.load %arg9[%c0_26, %c0_27] : memref<1x256xf32, #tpu.memory_space<vmem>>, vector<1x256xf32>
    %54 = vector.broadcast %53 : vector<1x256xf32> to vector<8x256xf32>
    %55 = arith.addf %52, %54 : vector<8x256xf32>
    %c0_28 = arith.constant 0 : index
    %c0_29 = arith.constant 0 : index
    %56 = vector.load %arg10[%c0_28, %c0_29] : memref<8x256xf32, #tpu.memory_space<vmem>>, vector<8x256xf32>
    tpu.vector_store %arg10[%c0_28, %c0_29], %55 {strides = array<i32>} : memref<8x256xf32, #tpu.memory_space<vmem>>, vector<8x256xf32>,
    return
  }
  func.func @transform_0(%arg0: i32) -> (i32, i32) {
    %c0_i32 = arith.constant 0 : i32
    %c0_i32_0 = arith.constant 0 : i32
    return %arg0, %c0_i32 : i32, i32
  }
  func.func @transform_1(%arg0: i32) -> (i32, i32) {
    %c0_i32 = arith.constant 0 : i32
    %c0_i32_0 = arith.constant 0 : i32
    %c0_i32_1 = arith.constant 0 : i32
    return %c0_i32, %c0_i32_0 : i32, i32
  }
  func.func @transform_2(%arg0: i32) -> (i32, i32) {
    %c0_i32 = arith.constant 0 : i32
    %c0_i32_0 = arith.constant 0 : i32
    %c0_i32_1 = arith.constant 0 : i32
    return %c0_i32, %c0_i32_0 : i32, i32
  }
  func.func @transform_3(%arg0: i32) -> (i32, i32) {
    %c0_i32 = arith.constant 0 : i32
    %c0_i32_0 = arith.constant 0 : i32
    %c0_i32_1 = arith.constant 0 : i32
    return %c0_i32, %c0_i32_0 : i32, i32
  }
  func.func @transform_4(%arg0: i32) -> (i32, i32) {
    %c0_i32 = arith.constant 0 : i32
    %c0_i32_0 = arith.constant 0 : i32
    %c0_i32_1 = arith.constant 0 : i32
    return %c0_i32, %c0_i32_0 : i32, i32
  }
  func.func @transform_5(%arg0: i32) -> (i32, i32) {
    %c0_i32 = arith.constant 0 : i32
    %c0_i32_0 = arith.constant 0 : i32
    %c0_i32_1 = arith.constant 0 : i32
    return %c0_i32, %c0_i32_0 : i32, i32
  }
  func.func @transform_6(%arg0: i32) -> (i32, i32) {
    %c0_i32 = arith.constant 0 : i32
    %c0_i32_0 = arith.constant 0 : i32
    %c0_i32_1 = arith.constant 0 : i32
    return %c0_i32, %c0_i32_0 : i32, i32
  }
  func.func @transform_7(%arg0: i32) -> (i32, i32) {
    %c0_i32 = arith.constant 0 : i32
    %c0_i32_0 = arith.constant 0 : i32
    %c0_i32_1 = arith.constant 0 : i32
    return %c0_i32, %c0_i32_0 : i32, i32
  }
  func.func @transform_8(%arg0: i32) -> (i32, i32) {
    %c0_i32 = arith.constant 0 : i32
    %c0_i32_0 = arith.constant 0 : i32
    %c0_i32_1 = arith.constant 0 : i32
    return %c0_i32, %c0_i32_0 : i32, i32
  }
  func.func @transform_9(%arg0: i32) -> (i32, i32) {
    %c0_i32 = arith.constant 0 : i32
    %c0_i32_0 = arith.constant 0 : i32
    return %arg0, %c0_i32 : i32, i32
  }
}

</mosaic_0001>

<llo_original>
// kernel: tpu_custom_call.1
$region0: #{tpu_custom_call.1}
  #allocation0 [shape = 'u32[]', space=smem, size = 0x4, offset = 0x4, fixed_abs, tag = 'smem constant byte address 0x4 - core index']
  #allocation1 [shape = 'u32[144,128]{1,0:T(1,128)}', space=vmem, size = 0x12000, scoped, tag = 'internal scratch']
  %s0 = inlined_call_operand.hbm [shape: f32[8,128], index: 0, kind: input, shape index: {}]
  %s1 = inlined_call_operand.hbm [shape: bf16[128,128], index: 1, kind: input, shape index: {}]
  %s2 = inlined_call_operand.vmem [shape: f32[1,128], index: 2, kind: input, shape index: {}]
  %s3 = inlined_call_operand.vmem [shape: f32[1,128], index: 3, kind: input, shape index: {}]
  %s4 = inlined_call_operand.vmem [shape: f32[1,128], index: 4, kind: input, shape index: {}]
  %s5 = inlined_call_operand.hbm [shape: bf16[128,256], index: 5, kind: input, shape index: {}]
  %s6 = inlined_call_operand.vmem [shape: f32[1,256], index: 6, kind: input, shape index: {}]
  %s7 = inlined_call_operand.hbm [shape: bf16[256,256], index: 7, kind: input, shape index: {}]
  %s8 = inlined_call_operand.vmem [shape: f32[1,256], index: 8, kind: input, shape index: {}]
  %s9 = inlined_call_operand.hbm [shape: f32[8,256], index: 9, kind: output, shape index: {}]
  %s10 = sld [smem:[#allocation0]]
  $region62: #{tpu_custom_call.1} parent=0
    _
  %s12 = ssub.s32 1, %s10
  %s13 = scalar_select 0, %s12, %s10
  $region1: #{tpu_custom_call.1} parent=0
    #allocation2 [shape = 'u8[4096]{0}', space=vmem, size = 0x1000, scoped, tag = 'input window, operand 0, single buffered']
    #allocation3 [shape = 's32[1]{0}', space=sflag, size = 0x4, scoped, tag = 'scoped memory for tpu_custom_call.1']
    #allocation4 [shape = 's32[1]{0}', space=sflag, size = 0x4, scoped, tag = 'scoped memory for tpu_custom_call.1']
    #allocation5 [shape = 'u8[32768]{0}', space=vmem, size = 0x8000, scoped, tag = 'input window, operand 1, single buffered']
    #allocation6 [shape = 's32[1]{0}', space=sflag, size = 0x4, scoped, tag = 'scoped memory for tpu_custom_call.1']
    #allocation7 [shape = 'u8[65536]{0}', space=vmem, size = 0x10000, scoped, tag = 'input window, operand 5, single buffered']
    #allocation8 [shape = 'u8[131072]{0}', space=vmem, size = 0x20000, scoped, tag = 'input window, operand 7, single buffered']
    #allocation9 [shape = 's32[1]{0}', space=sflag, size = 0x4, scoped, tag = 'scoped memory for tpu_custom_call.1']
    #allocation10 [shape = 'u8[8192]{0}', space=vmem, size = 0x2000, scoped, tag = 'output window, operand 0, single buffered']
    %14 = vsyncpa [#allocation3], 0
    %15 = vsyncpa [#allocation6], 0
    %16 = vsyncpa [#allocation9], 0
    %17 = vsyncpa [#allocation4], 0
    // Predicated region
    $region2: #{tpu_custom_call.1} parent=1 // pred_check
      _
    $region3: #{tpu_custom_call.1} parent=1 // pred_check_branch
      %19 = sbr.rel (0) target = $region5
    $region4: #{tpu_custom_call.1} parent=1 // pred_region
      %s21 = ssub.s32 128, 128
      %22 = vsyncadd [#allocation3], %s21
      %s24 = sshll.u32 [#allocation2], 4
      %s25 = int_to_ptr.vmem [resolvable:$true] %s24
      %27 = dma.hbm_to_vmem [thread:$0]  %s0, 128, %s25, [#allocation3]
    $region5: #{tpu_custom_call.1} parent=1 // pred_fallthru
      _
    // Predicated region
    $region6: #{tpu_custom_call.1} parent=1 // pred_check
      _
    $region7: #{tpu_custom_call.1} parent=1 // pred_check_branch
      %29 = sbr.rel (0) target = $region9
    $region8: #{tpu_custom_call.1} parent=1 // pred_region
      %s31 = ssub.s32 1024, 1024
      %32 = vsyncadd [#allocation6], %s31
      %s33 = sshll.u32 [#allocation5], 4
      %s34 = int_to_ptr.vmem [resolvable:$true] %s33
      %39 = dma.hbm_to_vmem [thread:$0]  %s1, 1024, %s34, [#allocation6], 64, 64, 4
    $region9: #{tpu_custom_call.1} parent=1 // pred_fallthru
      _
    // Predicated region
    $region10: #{tpu_custom_call.1} parent=1 // pred_check
      _
    $region11: #{tpu_custom_call.1} parent=1 // pred_check_branch
      %41 = sbr.rel (0) target = $region13
    $region12: #{tpu_custom_call.1} parent=1 // pred_region
      _
    $region13: #{tpu_custom_call.1} parent=1 // pred_fallthru
      _
    // Predicated region
    $region14: #{tpu_custom_call.1} parent=1 // pred_check
      _
    $region15: #{tpu_custom_call.1} parent=1 // pred_check_branch
      %43 = sbr.rel (0) target = $region17
    $region16: #{tpu_custom_call.1} parent=1 // pred_region
      _
    $region17: #{tpu_custom_call.1} parent=1 // pred_fallthru
      _
    // Predicated region
    $region18: #{tpu_custom_call.1} parent=1 // pred_check
      _
    $region19: #{tpu_custom_call.1} parent=1 // pred_check_branch
      %45 = sbr.rel (0) target = $region21
    $region20: #{tpu_custom_call.1} parent=1 // pred_region
      _
    $region21: #{tpu_custom_call.1} parent=1 // pred_fallthru
      _
    // Predicated region
    $region22: #{tpu_custom_call.1} parent=1 // pred_check
      _
    $region23: #{tpu_custom_call.1} parent=1 // pred_check_branch
      %47 = sbr.rel (0) target = $region25
    $region24: #{tpu_custom_call.1} parent=1 // pred_region
      %s49 = ssub.s32 2048, 2048
      %50 = vsyncadd [#allocation6], %s49
      %s51 = sshll.u32 [#allocation7], 4
      %s52 = int_to_ptr.vmem [resolvable:$true] %s51
      %57 = dma.hbm_to_vmem [thread:$0]  %s5, 2048, %s52, [#allocation6], 128, 128, 8
    $region25: #{tpu_custom_call.1} parent=1 // pred_fallthru
      _
    // Predicated region
    $region26: #{tpu_custom_call.1} parent=1 // pred_check
      _
    $region27: #{tpu_custom_call.1} parent=1 // pred_check_branch
      %59 = sbr.rel (0) target = $region29
    $region28: #{tpu_custom_call.1} parent=1 // pred_region
      _
    $region29: #{tpu_custom_call.1} parent=1 // pred_fallthru
      _
    // Predicated region
    $region30: #{tpu_custom_call.1} parent=1 // pred_check
      _
    $region31: #{tpu_custom_call.1} parent=1 // pred_check_branch
      %61 = sbr.rel (0) target = $region33
    $region32: #{tpu_custom_call.1} parent=1 // pred_region
      %s63 = ssub.s32 4096, 4096
      %64 = vsyncadd [#allocation9], %s63
      %s65 = sshll.u32 [#allocation8], 4
      %s66 = int_to_ptr.vmem [resolvable:$true] %s65
      %71 = dma.hbm_to_vmem [thread:$0]  %s7, 4096, %s66, [#allocation9], 128, 128, 8
    $region33: #{tpu_custom_call.1} parent=1 // pred_fallthru
      _
    // Predicated region
    $region34: #{tpu_custom_call.1} parent=1 // pred_check
      _
    $region35: #{tpu_custom_call.1} parent=1 // pred_check_branch
      %73 = sbr.rel (0) target = $region37
    $region36: #{tpu_custom_call.1} parent=1 // pred_region
      _
    $region37: #{tpu_custom_call.1} parent=1 // pred_fallthru
      _
    // Predicated region
    $region38: #{tpu_custom_call.1} parent=1 // pred_check
      _
    $region39: #{tpu_custom_call.1} parent=1 // pred_check_branch
      %75 = sbr.rel (0) target = $region41
    $region40: #{tpu_custom_call.1} parent=1 // pred_region
      %76 = dma.done [#allocation3], 128
    $region41: #{tpu_custom_call.1} parent=1 // pred_fallthru
      _
    // Predicated region
    $region42: #{tpu_custom_call.1} parent=1 // pred_check
      _
    $region43: #{tpu_custom_call.1} parent=1 // pred_check_branch
      %78 = sbr.rel (0) target = $region45
    $region44: #{tpu_custom_call.1} parent=1 // pred_region
      %79 = dma.done [#allocation6], 1024
    $region45: #{tpu_custom_call.1} parent=1 // pred_fallthru
      _
    // Predicated region
    $region46: #{tpu_custom_call.1} parent=1 // pred_check
      _
    $region47: #{tpu_custom_call.1} parent=1 // pred_check_branch
      %81 = sbr.rel (0) target = $region49
    $region48: #{tpu_custom_call.1} parent=1 // pred_region
      %82 = dma.done [#allocation6], 2048
    $region49: #{tpu_custom_call.1} parent=1 // pred_fallthru
      _
    // Predicated region
    $region50: #{tpu_custom_call.1} parent=1 // pred_check
      _
    $region51: #{tpu_custom_call.1} parent=1 // pred_check_branch
      %84 = sbr.rel (0) target = $region53
    $region52: #{tpu_custom_call.1} parent=1 // pred_region
      %85 = dma.done [#allocation9], 4096
    $region53: #{tpu_custom_call.1} parent=1 // pred_fallthru
      _
    %v87 = vld [vmem:[#allocation2] sm:$0xff]
    %v88 = vpack.c.bf16 %v87, %v87
    %v89 = vld [vmem:[#allocation5] sm:$0xf]
    %v90 = vld [vmem:[#allocation5 + $0x4] sm:$0xf]
    %v91 = vld [vmem:[#allocation5 + $0x8] sm:$0xf]
    %v92 = vld [vmem:[#allocation5 + $0xc] sm:$0xf]
    %v93 = vld [vmem:[#allocation5 + $0x10] sm:$0xf]
    %v94 = vld [vmem:[#allocation5 + $0x14] sm:$0xf]
    %v95 = vld [vmem:[#allocation5 + $0x18] sm:$0xf]
    %v96 = vld [vmem:[#allocation5 + $0x1c] sm:$0xf]
    %v97 = vld [vmem:[#allocation5 + $0x20] sm:$0xf]
    %v98 = vld [vmem:[#allocation5 + $0x24] sm:$0xf]
    %v99 = vld [vmem:[#allocation5 + $0x28] sm:$0xf]
    %v100 = vld [vmem:[#allocation5 + $0x2c] sm:$0xf]
    %v101 = vld [vmem:[#allocation5 + $0x30] sm:$0xf]
    %v102 = vld [vmem:[#allocation5 + $0x34] sm:$0xf]
    %v103 = vld [vmem:[#allocation5 + $0x38] sm:$0xf]
    %v104 = vld [vmem:[#allocation5 + $0x3c] sm:$0xf]
    %v105 = vld [vmem:[%s2] sm:$0x1]
    %v107 = vlaneseq
    %v108 = vshrl.u32 %v107, 7
    %v109 = vsub.s32 0, %v108
    %v110 = vrot.slane %v105, %v109
    %v128 = vunpack.c.l.b16 %v89
    %v129 = vunpack.c.l.b16 %v90
    %v130 = vunpack.c.l.b16 %v91
    %v131 = vunpack.c.l.b16 %v92
    %v132 = vunpack.c.l.b16 %v93
    %v133 = vunpack.c.l.b16 %v94
    %v134 = vunpack.c.l.b16 %v95
    %v135 = vunpack.c.l.b16 %v96
    %v136 = vunpack.c.l.b16 %v97
    %v137 = vunpack.c.l.b16 %v98
    %v138 = vunpack.c.l.b16 %v99
    %v139 = vunpack.c.l.b16 %v100
    %v140 = vunpack.c.l.b16 %v101
    %v141 = vunpack.c.l.b16 %v102
    %v142 = vunpack.c.l.b16 %v103
    %v143 = vunpack.c.l.b16 %v104
    %v144 = vpack.c.b16 %v129, %v128
    %v145 = vpack.c.b16 %v131, %v130
    %v146 = vpack.c.b16 %v133, %v132
    %v147 = vpack.c.b16 %v135, %v134
    %v148 = vpack.c.b16 %v137, %v136
    %v149 = vpack.c.b16 %v139, %v138
    %v150 = vpack.c.b16 %v141, %v140
    %v151 = vpack.c.b16 %v143, %v142
    %160 = vmatprep.subr.bf16.mxu0 0
    %161 = vmatpush1.bf16.msra.mxu0 %v144
    %162 = vmatprep.subr.bf16.mxu0 0
    %163 = vmatpush1.bf16.msra.mxu0 %v145
    %164 = vmatprep.subr.bf16.mxu0 0
    %165 = vmatpush1.bf16.msra.mxu0 %v146
    %166 = vmatprep.subr.bf16.mxu0 0
    %167 = vmatpush1.bf16.msra.mxu0 %v147
    %168 = vmatprep.subr.bf16.mxu0 0
    %169 = vmatpush1.bf16.msra.mxu0 %v148
    %170 = vmatprep.subr.bf16.mxu0 0
    %171 = vmatpush1.bf16.msra.mxu0 %v149
    %172 = vmatprep.subr.bf16.mxu0 0
    %173 = vmatpush1.bf16.msra.mxu0 %v150
    %174 = vmatprep.subr.bf16.mxu0 0
    %175 = vmatpush1.bf16.msra.mxu0 %v151
    %176 = vmatprep.subr.bf16.mxu0 0
    %177 = vmatpush1.bf16.msra.mxu0 0
    %178 = vmatprep.subr.bf16.mxu0 0
    %179 = vmatpush1.bf16.msra.mxu0 0
    %180 = vmatprep.subr.bf16.mxu0 0
    %181 = vmatpush1.bf16.msra.mxu0 0
    %182 = vmatprep.subr.bf16.mxu0 0
    %183 = vmatpush1.bf16.msra.mxu0 0
    %184 = vmatprep.subr.bf16.mxu0 0
    %185 = vmatpush1.bf16.msra.mxu0 0
    %186 = vmatprep.subr.bf16.mxu0 0
    %187 = vmatpush1.bf16.msra.mxu0 0
    %188 = vmatprep.subr.bf16.mxu0 0
    %189 = vmatpush1.bf16.msra.mxu0 0
    %190 = vmatprep.subr.bf16.mxu0 0
    %191 = vmatpush1.bf16.msra.mxu0 0
    %192 = vmatprep.mubr.bf16.mxu0 0
    %193 = vmatmul.mubr.bf16.gmra.mrb[0].mxu0 %v88
    %v194 = vpop.f32.mrb[0].mxu0
    %v195 = vadd.f32 %v110, %v194
    %v196 = vpop.f32.mrb[0].mxu0
    %v197 = vpop.f32.mrb[0].mxu0
    %v198 = vpop.f32.mrb[0].mxu0
    %199 = vdwg.mxu0
    %200 = vadd.xlane.f32.xlu0 %v195
    %v201 = vpop.xlane.xlu0 %200
    %v202 = vrcp.pop 128.0
    %v203 = vmul.f32 %v201, %v202
    %v204 = vsub.f32 %v195, %v203
    %v205 = vmul.f32 %v204, %v204
    %206 = vadd.xlane.f32.xlu0 %v205
    %v207 = vpop.xlane.xlu0 %206
    %v208 = vmul.f32 %v207, %v202
    %v209 = vadd.f32 %v208, 1e-06
    %v210 = vrsqrt.pop %v209
    %v211 = vmul.f32 %v204, %v210
    %v212 = vld [vmem:[%s3] sm:$0x1]
    %v214 = vlaneseq
    %v215 = vshrl.u32 %v214, 7
    %v216 = vsub.s32 0, %v215
    %v217 = vrot.slane %v212, %v216
    %v219 = vmul.f32 %v211, %v217
    %v220 = vld [vmem:[%s4] sm:$0x1]
    %v222 = vlaneseq
    %v223 = vshrl.u32 %v222, 7
    %v224 = vsub.s32 0, %v223
    %v225 = vrot.slane %v220, %v224
    %v227 = vadd.f32 %v219, %v225
    %v228 = vpack.c.bf16 %v227, %v227
    %v229 = vld [vmem:[#allocation7] sm:$0xff]
    %v230 = vld [vmem:[#allocation7 + $0x8] sm:$0xff]
    %v231 = vld [vmem:[#allocation7 + $0x10] sm:$0xff]
    %v232 = vld [vmem:[#allocation7 + $0x18] sm:$0xff]
    %v233 = vld [vmem:[#allocation7 + $0x20] sm:$0xff]
    %v234 = vld [vmem:[#allocation7 + $0x28] sm:$0xff]
    %v235 = vld [vmem:[#allocation7 + $0x30] sm:$0xff]
    %v236 = vld [vmem:[#allocation7 + $0x38] sm:$0xff]
    %v237 = vld [vmem:[#allocation7 + $0x40] sm:$0xff]
    %v238 = vld [vmem:[#allocation7 + $0x48] sm:$0xff]
    %v239 = vld [vmem:[#allocation7 + $0x50] sm:$0xff]
    %v240 = vld [vmem:[#allocation7 + $0x58] sm:$0xff]
    %v241 = vld [vmem:[#allocation7 + $0x60] sm:$0xff]
    %v242 = vld [vmem:[#allocation7 + $0x68] sm:$0xff]
    %v243 = vld [vmem:[#allocation7 + $0x70] sm:$0xff]
    %v244 = vld [vmem:[#allocation7 + $0x78] sm:$0xff]
    %v245 = vld [vmem:[%s6] sm:$0x3]
    %v247 = vlaneseq
    %v248 = vshrl.u32 %v247, 7
    %v249 = vsub.s32 0, %v248
    %v250 = vrot.slane %v245, %v249
    %v251 = vlaneseq
    %v252 = vshrl.u32 %v251, 7
    %v253 = vsub.s32 1, %v252
    %v254 = vrot.slane %v245, %v253
    %v273 = vunpack.c.l.b16 %v229
    %v274 = vunpack.c.h.b16 %v229
    %v275 = vunpack.c.l.b16 %v230
    %v276 = vunpack.c.h.b16 %v230
    %v277 = vunpack.c.l.b16 %v231
    %v278 = vunpack.c.h.b16 %v231
    %v279 = vunpack.c.l.b16 %v232
    %v280 = vunpack.c.h.b16 %v232
    %v281 = vunpack.c.l.b16 %v233
    %v282 = vunpack.c.h.b16 %v233
    %v283 = vunpack.c.l.b16 %v234
    %v284 = vunpack.c.h.b16 %v234
    %v285 = vunpack.c.l.b16 %v235
    %v286 = vunpack.c.h.b16 %v235
    %v287 = vunpack.c.l.b16 %v236
    %v288 = vunpack.c.h.b16 %v236
    %v289 = vunpack.c.l.b16 %v237
    %v290 = vunpack.c.h.b16 %v237
    %v291 = vunpack.c.l.b16 %v238
    %v292 = vunpack.c.h.b16 %v238
    %v293 = vunpack.c.l.b16 %v239
    %v294 = vunpack.c.h.b16 %v239
    %v295 = vunpack.c.l.b16 %v240
    %v296 = vunpack.c.h.b16 %v240
    %v297 = vunpack.c.l.b16 %v241
    %v298 = vunpack.c.h.b16 %v241
    %v299 = vunpack.c.l.b16 %v242
    %v300 = vunpack.c.h.b16 %v242
    %v301 = vunpack.c.l.b16 %v243
    %v302 = vunpack.c.h.b16 %v243
    %v303 = vunpack.c.l.b16 %v244
    %v304 = vunpack.c.h.b16 %v244
    %v305 = vpack.c.b16 %v275, %v273
    %v306 = vpack.c.b16 %v276, %v274
    %v307 = vpack.c.b16 %v279, %v277
    %v308 = vpack.c.b16 %v280, %v278
    %v309 = vpack.c.b16 %v283, %v281
    %v310 = vpack.c.b16 %v284, %v282
    %v311 = vpack.c.b16 %v287, %v285
    %v312 = vpack.c.b16 %v288, %v286
    %v313 = vpack.c.b16 %v291, %v289
    %v314 = vpack.c.b16 %v292, %v290
    %v315 = vpack.c.b16 %v295, %v293
    %v316 = vpack.c.b16 %v296, %v294
    %v317 = vpack.c.b16 %v299, %v297
    %v318 = vpack.c.b16 %v300, %v298
    %v319 = vpack.c.b16 %v303, %v301
    %v320 = vpack.c.b16 %v304, %v302
    %337 = vmatprep.subr.bf16.mxu0 %v306
    %338 = vmatpush1.bf16.msra.mxu0 %v305
    %339 = vmatprep.subr.bf16.mxu0 %v308
    %340 = vmatpush1.bf16.msra.mxu0 %v307
    %341 = vmatprep.subr.bf16.mxu0 %v310
    %342 = vmatpush1.bf16.msra.mxu0 %v309
    %343 = vmatprep.subr.bf16.mxu0 %v312
    %344 = vmatpush1.bf16.msra.mxu0 %v311
    %345 = vmatprep.subr.bf16.mxu0 %v314
    %346 = vmatpush1.bf16.msra.mxu0 %v313
    %347 = vmatprep.subr.bf16.mxu0 %v316
    %348 = vmatpush1.bf16.msra.mxu0 %v315
    %349 = vmatprep.subr.bf16.mxu0 %v318
    %350 = vmatpush1.bf16.msra.mxu0 %v317
    %351 = vmatprep.subr.bf16.mxu0 %v320
    %352 = vmatpush1.bf16.msra.mxu0 %v319
    %353 = vmatprep.subr.bf16.mxu0 0
    %354 = vmatpush1.bf16.msra.mxu0 0
    %355 = vmatprep.subr.bf16.mxu0 0
    %356 = vmatpush1.bf16.msra.mxu0 0
    %357 = vmatprep.subr.bf16.mxu0 0
    %358 = vmatpush1.bf16.msra.mxu0 0
    %359 = vmatprep.subr.bf16.mxu0 0
    %360 = vmatpush1.bf16.msra.mxu0 0
    %361 = vmatprep.subr.bf16.mxu0 0
    %362 = vmatpush1.bf16.msra.mxu0 0
    %363 = vmatprep.subr.bf16.mxu0 0
    %364 = vmatpush1.bf16.msra.mxu0 0
    %365 = vmatprep.subr.bf16.mxu0 0
    %366 = vmatpush1.bf16.msra.mxu0 0
    %367 = vmatprep.subr.bf16.mxu0 0
    %368 = vmatpush1.bf16.msra.mxu0 0
    %369 = vmatprep.mubr.bf16.mxu0 0
    %370 = vmatmul.mubr.bf16.gmra.mrb[0].mxu0 %v228
    %v371 = vpop.f32.mrb[0].mxu0
    %v372 = vadd.f32 %v250, %v371
    %v373 = vpop.f32.mrb[0].mxu0
    %v374 = vadd.f32 %v254, %v373
    %v375 = vpop.f32.mrb[0].mxu0
    %v376 = vpop.f32.mrb[0].mxu0
    %377 = vdwg.mxu0
    %v378 = vmul.f32 %v372, %v372
    %v379 = vmul.f32 %v374, %v374
    %v380 = vmul.f32 %v372, %v378
    %v381 = vmul.f32 %v374, %v379
    %v382 = vmul.f32 %v380, 0.044715
    %v383 = vmul.f32 %v381, 0.044715
    %v384 = vadd.f32 %v372, %v382
    %v385 = vadd.f32 %v374, %v383
    %v386 = vmul.f32 %v384, 0.7978846
    %v387 = vmul.f32 %v385, 0.7978846
    %v388 = vtanh.pop %v386
    %v389 = vtanh.pop %v387
    %v390 = vadd.f32 %v388, 1.0
    %v391 = vadd.f32 %v389, 1.0
    %v392 = vmul.f32 %v390, 0.5
    %v393 = vmul.f32 %v391, 0.5
    %v394 = vmul.f32 %v372, %v392
    %v395 = vmul.f32 %v374, %v393
    %v396 = vpack.c.bf16 %v394, %v394
    %v397 = vpack.c.bf16 %v395, %v395
    %v398 = vld [vmem:[#allocation8] sm:$0xff]
    %v399 = vld [vmem:[#allocation8 + $0x8] sm:$0xff]
    %v400 = vld [vmem:[#allocation8 + $0x10] sm:$0xff]
    %v401 = vld [vmem:[#allocation8 + $0x18] sm:$0xff]
    %v402 = vld [vmem:[#allocation8 + $0x20] sm:$0xff]
    %v403 = vld [vmem:[#allocation8 + $0x28] sm:$0xff]
    %v404 = vld [vmem:[#allocation8 + $0x30] sm:$0xff]
    %v405 = vld [vmem:[#allocation8 + $0x38] sm:$0xff]
    %v406 = vld [vmem:[#allocation8 + $0x40] sm:$0xff]
    %v407 = vld [vmem:[#allocation8 + $0x48] sm:$0xff]
    %v408 = vld [vmem:[#allocation8 + $0x50] sm:$0xff]
    %v409 = vld [vmem:[#allocation8 + $0x58] sm:$0xff]
    %v410 = vld [vmem:[#allocation8 + $0x60] sm:$0xff]
    %v411 = vld [vmem:[#allocation8 + $0x68] sm:$0xff]
    %v412 = vld [vmem:[#allocation8 + $0x70] sm:$0xff]
    %v413 = vld [vmem:[#allocation8 + $0x78] sm:$0xff]
    %v414 = vld [vmem:[#allocation8 + $0x80] sm:$0xff]
    %v415 = vld [vmem:[#allocation8 + $0x88] sm:$0xff]
    %v416 = vld [vmem:[#allocation8 + $0x90] sm:$0xff]
    %v417 = vld [vmem:[#allocation8 + $0x98] sm:$0xff]
    %v418 = vld [vmem:[#allocation8 + $0xa0] sm:$0xff]
    %v419 = vld [vmem:[#allocation8 + $0xa8] sm:$0xff]
    %v420 = vld [vmem:[#allocation8 + $0xb0] sm:$0xff]
    %v421 = vld [vmem:[#allocation8 + $0xb8] sm:$0xff]
    %v422 = vld [vmem:[#allocation8 + $0xc0] sm:$0xff]
    %v423 = vld [vmem:[#allocation8 + $0xc8] sm:$0xff]
    %v424 = vld [vmem:[#allocation8 + $0xd0] sm:$0xff]
    %v425 = vld [vmem:[#allocation8 + $0xd8] sm:$0xff]
    %v426 = vld [vmem:[#allocation8 + $0xe0] sm:$0xff]
    %v427 = vld [vmem:[#allocation8 + $0xe8] sm:$0xff]
    %v428 = vld [vmem:[#allocation8 + $0xf0] sm:$0xff]
    %v429 = vld [vmem:[#allocation8 + $0xf8] sm:$0xff]
    %v430 = vld [vmem:[%s8] sm:$0x3]
    %v432 = vlaneseq
    %v433 = vshrl.u32 %v432, 7
    %v434 = vsub.s32 0, %v433
    %v435 = vrot.slane %v430, %v434
    %v436 = vlaneseq
    %v437 = vshrl.u32 %v436, 7
    %v438 = vsub.s32 1, %v437
    %v439 = vrot.slane %v430, %v438
    %v474 = vunpack.c.l.b16 %v398
    %v475 = vunpack.c.h.b16 %v398
    %v476 = vunpack.c.l.b16 %v399
    %v477 = vunpack.c.h.b16 %v399
    %v478 = vunpack.c.l.b16 %v400
    %v479 = vunpack.c.h.b16 %v400
    %v480 = vunpack.c.l.b16 %v401
    %v481 = vunpack.c.h.b16 %v401
    %v482 = vunpack.c.l.b16 %v402
    %v483 = vunpack.c.h.b16 %v402
    %v484 = vunpack.c.l.b16 %v403
    %v485 = vunpack.c.h.b16 %v403
    %v486 = vunpack.c.l.b16 %v404
    %v487 = vunpack.c.h.b16 %v404
    %v488 = vunpack.c.l.b16 %v405
    %v489 = vunpack.c.h.b16 %v405
    %v490 = vunpack.c.l.b16 %v406
    %v491 = vunpack.c.h.b16 %v406
    %v492 = vunpack.c.l.b16 %v407
    %v493 = vunpack.c.h.b16 %v407
    %v494 = vunpack.c.l.b16 %v408
    %v495 = vunpack.c.h.b16 %v408
    %v496 = vunpack.c.l.b16 %v409
    %v497 = vunpack.c.h.b16 %v409
    %v498 = vunpack.c.l.b16 %v410
    %v499 = vunpack.c.h.b16 %v410
    %v500 = vunpack.c.l.b16 %v411
    %v501 = vunpack.c.h.b16 %v411
    %v502 = vunpack.c.l.b16 %v412
    %v503 = vunpack.c.h.b16 %v412
    %v504 = vunpack.c.l.b16 %v413
    %v505 = vunpack.c.h.b16 %v413
    %v506 = vunpack.c.l.b16 %v414
    %v507 = vunpack.c.h.b16 %v414
    %v508 = vunpack.c.l.b16 %v415
    %v509 = vunpack.c.h.b16 %v415
    %v510 = vunpack.c.l.b16 %v416
    %v511 = vunpack.c.h.b16 %v416
    %v512 = vunpack.c.l.b16 %v417
    %v513 = vunpack.c.h.b16 %v417
    %v514 = vunpack.c.l.b16 %v418
    %v515 = vunpack.c.h.b16 %v418
    %v516 = vunpack.c.l.b16 %v419
    %v517 = vunpack.c.h.b16 %v419
    %v518 = vunpack.c.l.b16 %v420
    %v519 = vunpack.c.h.b16 %v420
    %v520 = vunpack.c.l.b16 %v421
    %v521 = vunpack.c.h.b16 %v421
    %v522 = vunpack.c.l.b16 %v422
    %v523 = vunpack.c.h.b16 %v422
    %v524 = vunpack.c.l.b16 %v423
    %v525 = vunpack.c.h.b16 %v423
    %v526 = vunpack.c.l.b16 %v424
    %v527 = vunpack.c.h.b16 %v424
    %v528 = vunpack.c.l.b16 %v425
    %v529 = vunpack.c.h.b16 %v425
    %v530 = vunpack.c.l.b16 %v426
    %v531 = vunpack.c.h.b16 %v426
    %v532 = vunpack.c.l.b16 %v427
    %v533 = vunpack.c.h.b16 %v427
    %v534 = vunpack.c.l.b16 %v428
    %v535 = vunpack.c.h.b16 %v428
    %v536 = vunpack.c.l.b16 %v429
    %v537 = vunpack.c.h.b16 %v429
    %v538 = vpack.c.b16 %v476, %v474
    %v539 = vpack.c.b16 %v477, %v475
    %v540 = vpack.c.b16 %v480, %v478
    %v541 = vpack.c.b16 %v481, %v479
    %v542 = vpack.c.b16 %v484, %v482
    %v543 = vpack.c.b16 %v485, %v483
    %v544 = vpack.c.b16 %v488, %v486
    %v545 = vpack.c.b16 %v489, %v487
    %v546 = vpack.c.b16 %v492, %v490
    %v547 = vpack.c.b16 %v493, %v491
    %v548 = vpack.c.b16 %v496, %v494
    %v549 = vpack.c.b16 %v497, %v495
    %v550 = vpack.c.b16 %v500, %v498
    %v551 = vpack.c.b16 %v501, %v499
    %v552 = vpack.c.b16 %v504, %v502
    %v553 = vpack.c.b16 %v505, %v503
    %v554 = vpack.c.b16 %v508, %v506
    %v555 = vpack.c.b16 %v509, %v507
    %v556 = vpack.c.b16 %v512, %v510
    %v557 = vpack.c.b16 %v513, %v511
    %v558 = vpack.c.b16 %v516, %v514
    %v559 = vpack.c.b16 %v517, %v515
    %v560 = vpack.c.b16 %v520, %v518
    %v561 = vpack.c.b16 %v521, %v519
    %v562 = vpack.c.b16 %v524, %v522
    %v563 = vpack.c.b16 %v525, %v523
    %v564 = vpack.c.b16 %v528, %v526
    %v565 = vpack.c.b16 %v529, %v527
    %v566 = vpack.c.b16 %v532, %v530
    %v567 = vpack.c.b16 %v533, %v531
    %v568 = vpack.c.b16 %v536, %v534
    %v569 = vpack.c.b16 %v537, %v535
    %602 = vmatprep.subr.bf16.mxu0 %v539
    %603 = vmatpush1.bf16.msra.mxu0 %v538
    %604 = vmatprep.subr.bf16.mxu0 %v541
    %605 = vmatpush1.bf16.msra.mxu0 %v540
    %606 = vmatprep.subr.bf16.mxu0 %v543
    %607 = vmatpush1.bf16.msra.mxu0 %v542
    %608 = vmatprep.subr.bf16.mxu0 %v545
    %609 = vmatpush1.bf16.msra.mxu0 %v544
    %610 = vmatprep.subr.bf16.mxu0 %v547
    %611 = vmatpush1.bf16.msra.mxu0 %v546
    %612 = vmatprep.subr.bf16.mxu0 %v549
    %613 = vmatpush1.bf16.msra.mxu0 %v548
    %614 = vmatprep.subr.bf16.mxu0 %v551
    %615 = vmatpush1.bf16.msra.mxu0 %v550
    %616 = vmatprep.subr.bf16.mxu0 %v553
    %617 = vmatpush1.bf16.msra.mxu0 %v552
    %618 = vmatprep.subr.bf16.mxu0 %v555
    %619 = vmatpush1.bf16.msra.mxu0 %v554
    %620 = vmatprep.subr.bf16.mxu0 %v557
    %621 = vmatpush1.bf16.msra.mxu0 %v556
    %622 = vmatprep.subr.bf16.mxu0 %v559
    %623 = vmatpush1.bf16.msra.mxu0 %v558
    %624 = vmatprep.subr.bf16.mxu0 %v561
    %625 = vmatpush1.bf16.msra.mxu0 %v560
    %626 = vmatprep.subr.bf16.mxu0 %v563
    %627 = vmatpush1.bf16.msra.mxu0 %v562
    %628 = vmatprep.subr.bf16.mxu0 %v565
    %629 = vmatpush1.bf16.msra.mxu0 %v564
    %630 = vmatprep.subr.bf16.mxu0 %v567
    %631 = vmatpush1.bf16.msra.mxu0 %v566
    %632 = vmatprep.subr.bf16.mxu0 %v569
    %633 = vmatpush1.bf16.msra.mxu0 %v568
    %634 = vmatprep.mubr.bf16.mxu0 %v397
    %635 = vmatmul.mubr.bf16.gmra.mrb[0].mxu0 %v396
    %v636 = vpop.f32.mrb[0].mxu0
    %v637 = vadd.f32 %v435, %v636
    %v638 = vpop.f32.mrb[0].mxu0
    %v639 = vadd.f32 %v439, %v638
    %v640 = vpop.f32.mrb[0].mxu0
    %v641 = vpop.f32.mrb[0].mxu0
    %642 = vdwg.mxu0
    %643 = vst [vmem:[#allocation10] sm:$0xff] %v637
    %644 = vst [vmem:[#allocation10 + $0x8] sm:$0xff] %v639
    // Predicated region
    $region54: #{tpu_custom_call.1} parent=1 // pred_check
      _
    $region55: #{tpu_custom_call.1} parent=1 // pred_check_branch
      %646 = sbr.rel (0) target = $region57
    $region56: #{tpu_custom_call.1} parent=1 // pred_region
      %s648 = ssub.s32 256, 256
      %649 = vsyncadd [#allocation4], %s648
      %s651 = sshll.u32 [#allocation10], 4
      %s652 = int_to_ptr.vmem [resolvable:$true] %s651
      %654 = dma.vmem_to_hbm [thread:$0]  %s652, 256, %s9, [#allocation4]
    $region57: #{tpu_custom_call.1} parent=1 // pred_fallthru
      _
    // Predicated region
    $region58: #{tpu_custom_call.1} parent=1 // pred_check
      _
    $region59: #{tpu_custom_call.1} parent=1 // pred_check_branch
      %656 = sbr.rel (0) target = $region61
    $region60: #{tpu_custom_call.1} parent=1 // pred_region
      %657 = dma.done [#allocation4], 256
    $region61: #{tpu_custom_call.1} parent=1 // pred_fallthru
      _
    %658 = vsyncpa [#allocation3], 1
    %659 = vsyncpa [#allocation6], 1
    %660 = vsyncpa [#allocation9], 1
    %661 = vsyncpa [#allocation4], 1

</llo_original>
